<compile_context>
chip_gen: v7x
topology: tpu7x:2x2x1
jax: 0.10.0
libtpu: 0.0.40
codegen_flags: <defaults>
</compile_context>

<pallas_src>
import math
import functools

import jax
import jax.numpy as jnp
from jax.experimental import pallas as pl
from jax.experimental.pallas import tpu as pltpu


def _pruning_kernel(feat_ref, wb_ref, sel_ref, b_ref, out_ref, l0_ref, *,
                    beta, zeta, gamma, tb, batch):
    i = pl.program_id(0)

    feat = feat_ref[...]                                         # (TB, F*D), lane-dense

    # Per-field linear: WB[f*D+d, f] = indicator[f,d] * w[d]  ->  lin (TB, F).
    # Single bf16 MXU pass; accuracy loss (~1e-3 on the pre-sigmoid logit) is
    # immaterial for a learned pruning gate.
    lin = jnp.dot(feat.astype(jnp.bfloat16), wb_ref[...],
                  preferred_element_type=jnp.float32)
    lin = jnp.maximum(lin + b_ref[0], 0.0)

    # Hard-concrete gate (deterministic / eval mode).
    sig = jax.nn.sigmoid(lin)
    z = jnp.clip(sig * (zeta - gamma) + gamma, 0.0, 1.0)         # (TB, F)
    pen = jax.nn.sigmoid(lin - beta * math.log(-gamma / zeta))   # (TB, F)

    # Mask rows of the (possibly partial) last batch block out of the L0 penalty.
    # Output stores for those rows are masked by Pallas automatically.
    row = i * tb + jax.lax.broadcasted_iota(jnp.int32, pen.shape, 0)
    pen = jnp.where(row < batch, pen, 0.0)
    l0_ref[...] = jnp.broadcast_to(jnp.sum(pen), l0_ref.shape)   # per-tile partial

    # Expand the per-field gate over the embedding dim with the exact 0/1 selector
    # sel[f, f*D+d] = 1. Two bf16 passes (hi/lo split of z) keep the gate value
    # ~f32-accurate while staying far cheaper than a 6-pass f32 matmul.
    sel = sel_ref[...]
    z_hi = z.astype(jnp.bfloat16)
    z_lo = (z - z_hi.astype(jnp.float32)).astype(jnp.bfloat16)
    z_exp = (jnp.dot(z_hi, sel, preferred_element_type=jnp.float32) +
             jnp.dot(z_lo, sel, preferred_element_type=jnp.float32))   # (TB, F*D)

    out_ref[...] = (feat * z_exp).astype(out_ref.dtype)


def _vmem_capacity_bytes(default=64 * 1024 * 1024):
    """Physical VMEM of the local TPU generation (fallback: conservative 64 MiB)."""
    try:
        cap = getattr(pltpu.get_tpu_info(), "vmem_capacity_bytes", None)
        if cap:
            return int(cap)
    except Exception:
        pass
    return default


def feature_pruning_v2(feature, indicator, w, b, *,
                       beta, zeta=1.1, gamma=-0.1, tb=None):
    B, F, D = feature.shape
    D2, O = w.shape
    assert D2 == D
    if O != 1:
        # TODO(synk): general outDim > 1 path not implemented (the module's broadcast
        # `feature * L0Out` itself requires outDim == 1 for distinct inDim).
        raise NotImplementedError("feature_pruning_v2 kernel supports outDim == 1 only")
    FD = F * D
    dtype = feature.dtype

    # Lane-dense view of the feature / output path (reshape of contiguous array: free).
    feat_flat = feature.reshape(B, FD)

    # Fold indicator and the linear weight into a block-diagonal (FD, F) matrix and
    # build the (F, FD) 0/1 selector used to expand the gate over D. Cast to bf16
    # wrapper-side (single-pass MXU operands; selector values 0/1 are exact in bf16).
    iw = (indicator.astype(jnp.float32) * w[:, 0].astype(jnp.float32)[None, :])  # (F, D)
    eye_f = jnp.eye(F, dtype=jnp.float32)
    wb = (iw[:, :, None] * eye_f[:, None, :]).reshape(FD, F).astype(jnp.bfloat16)
    sel = jnp.repeat(eye_f, D, axis=1).astype(jnp.bfloat16)                      # (F, FD)

    b_smem = jnp.asarray(b, jnp.float32).reshape(-1)[:1]                         # (1,) scalar bias

    # ---- generation-aware batch tile sizing -------------------------------------
    in_isz = jnp.dtype(dtype).itemsize
    vmem_cap = _vmem_capacity_bytes()
    vmem_limit = int(min(vmem_cap // 2, 64 * 1024 * 1024))      # 64 MiB on v5e/v6e, 32 MiB on v7x
    # Per-row VMEM: double-buffered in + out blocks (true dtype) + f32 z_exp temp
    # + bf16 feature cast + slack for compiler temporaries.
    bytes_per_row = FD * (2 * in_isz + 2 * in_isz + 4 + 2 + 2)
    usable = max(vmem_limit - 4 * 1024 * 1024, 2 * 1024 * 1024)
    max_rows = max(8, usable // bytes_per_row)
    cap = 8192 if tb is None else int(tb)
    tb_eff = max(8, (min(cap, max_rows) // 8) * 8)
    if B > 8:
        # Keep >= 2 grid steps so both v7x TensorCores get work under "parallel".
        half = ((((B + 1) // 2) + 7) // 8) * 8
        tb_eff = min(tb_eff, half)
    else:
        tb_eff = min(tb_eff, max(B, 1))   # block == full array dim is always legal
    num_tiles = pl.cdiv(B, tb_eff)

    kernel = functools.partial(_pruning_kernel, beta=float(beta), zeta=float(zeta),
                               gamma=float(gamma), tb=tb_eff, batch=B)

    cost = pl.CostEstimate(
        flops=int(6 * B * FD * F + 8 * B * FD),
        transcendentals=int(2 * B * F),
        bytes_accessed=int(2 * B * FD * in_isz + 4 * FD * F + num_tiles * 8 * 128 * 4),
    )

    out_flat, l0_part = pl.pallas_call(
        kernel,
        out_shape=(
            jax.ShapeDtypeStruct((B, FD), dtype),
            jax.ShapeDtypeStruct((num_tiles, 8, 128), jnp.float32),  # per-tile L0 partials
        ),
        grid_spec=pltpu.PrefetchScalarGridSpec(
            num_scalar_prefetch=0,
            grid=(num_tiles,),
            in_specs=[
                pl.BlockSpec((tb_eff, FD), lambda i: (i, 0)),        # feature (lane-dense)
                pl.BlockSpec((FD, F), lambda i: (0, 0)),             # folded indicator*W (bf16)
                pl.BlockSpec((F, FD), lambda i: (0, 0)),             # gate-expansion selector
                pl.BlockSpec(memory_space=pltpu.MemorySpace.SMEM),   # bias scalar
            ],
            out_specs=[
                pl.BlockSpec((tb_eff, FD), lambda i: (i, 0)),        # pruned output
                pl.BlockSpec((1, 8, 128), lambda i: (i, 0, 0)),      # L0 partial per tile
            ],
        ),
        compiler_params=pltpu.CompilerParams(
            dimension_semantics=("parallel",),     # no cross-tile deps -> both v7x TCs usable
            vmem_limit_bytes=vmem_limit,
        ),
        cost_estimate=cost,
    )(feat_flat, wb, sel, b_smem)

    out = out_flat.reshape(B, F, D)
    l0 = jnp.sum(l0_part[:, 0, 0])
    return out, l0


def _reference(feature, indicator, w, b, *, beta, zeta, gamma):
    masked = feature * indicator[None, :, :]
    lin = jnp.maximum(
        jnp.einsum("bfd,do->bfo", masked, w,
                   precision=jax.lax.Precision.HIGHEST) + b[0], 0.0)
    s = jax.nn.sigmoid(lin)
    z = jnp.clip(s * (zeta - gamma) + gamma, 0.0, 1.0)
    pen = jax.nn.sigmoid(lin - beta * math.log(-gamma / zeta))
    return feature * z, jnp.sum(pen)


if __name__ == "__main__":
    # Small shapes consistent with the module: per-field gate (outDim = 1).
    # B=12 with tb=8 exercises the multi-tile grid + un-padded partial last block.
    B, featureNumb, inDim, outDim = 12, 8, 32, 1
    beta, zeta, gamma = 2.0 / 3.0, 1.1, -0.1

    key = jax.random.PRNGKey(0)
    k_feat, k_ind, k_w, k_b = jax.random.split(key, 4)

    feature = jax.random.normal(k_feat, (B, featureNumb, inDim), dtype=jnp.float32)
    indicator = jax.random.uniform(k_ind, (featureNumb, inDim), dtype=jnp.float32)

    # Deterministic parameter init (nn.Linear(inDim, outDim) weight stored transposed).
    bound = 1.0 / math.sqrt(inDim)
    w = jax.random.uniform(k_w, (inDim, outDim), dtype=jnp.float32,
                           minval=-bound, maxval=bound)
    b = jax.random.uniform(k_b, (1, outDim), dtype=jnp.float32,
                           minval=-bound, maxval=bound)

    out, l0 = feature_pruning_v2(feature, indicator, w, b,
                                 beta=beta, zeta=zeta, gamma=gamma, tb=8)
    jax.block_until_ready((out, l0))

    ref_out, ref_l0 = _reference(feature, indicator, w, b,
                                 beta=beta, zeta=zeta, gamma=gamma)
    assert out.shape == feature.shape
    # Tolerance reflects the deliberate single-pass bf16 MXU reduction (perf review);
    # structural bugs produce O(0.1+) errors and are still caught.
    assert jnp.allclose(out, ref_out, atol=1e-2, rtol=1e-2), "output mismatch"
    assert jnp.allclose(l0, ref_l0, atol=5e-2, rtol=1e-3), "L0 mismatch"

    print("KERNEL_OK")
</pallas_src>

<mosaic_0001>
module attributes {stable_mosaic.version = 11 : i64} {
  func.func @_pruning_kernel(%arg0: i32, %arg1: memref<8x256xf32, #tpu.memory_space<vmem>>, %arg2: memref<256x8xbf16, #tpu.memory_space<vmem>>, %arg3: memref<8x256xbf16, #tpu.memory_space<vmem>>, %arg4: memref<1xf32, #tpu.memory_space<smem>>, %arg5: memref<8x256xf32, #tpu.memory_space<vmem>>, %arg6: memref<1x8x128xf32, #tpu.memory_space<vmem>>) attributes {dimension_semantics = [#tpu.dimension_semantics<parallel>], iteration_bounds = array<i64: 2>, scalar_prefetch = 0 : i64, scratch_operands = 0 : i64, tpu.core_type = #tpu.core_type<tc>, window_params = [{transform_indices = @transform_0, window_bounds = array<i64: 8, 256>}, {pipeline_mode = #tpu.pipeline_mode<synchronous>, transform_indices = @transform_1, window_bounds = array<i64: 256, 8>}, {pipeline_mode = #tpu.pipeline_mode<synchronous>, transform_indices = @transform_2, window_bounds = array<i64: 8, 256>}, {transform_indices = @transform_3, window_bounds = array<i64: 1>}, {transform_indices = @transform_4, window_bounds = array<i64: 8, 256>}, {transform_indices = @transform_5, window_bounds = array<i64: 1, 8, 128>}]} {
    %c0 = arith.constant 0 : index
    %c0_0 = arith.constant 0 : index
    %0 = vector.load %arg1[%c0, %c0_0] : memref<8x256xf32, #tpu.memory_space<vmem>>, vector<8x256xf32>
    %1 = arith.truncf %0 : vector<8x256xf32> to vector<8x256xbf16>
    %c0_1 = arith.constant 0 : index
    %c0_2 = arith.constant 0 : index
    %2 = vector.load %arg2[%c0_1, %c0_2] : memref<256x8xbf16, #tpu.memory_space<vmem>>, vector<256x8xbf16>
    %cst = arith.constant dense<0.000000e+00> : vector<8x8xf32>
    %3 = tpu.matmul %1, %2, %cst {dimension_numbers = #tpu.dot_dimension_numbers<[1], [0], [0], [1], [0, 0, 1, 1], [], []>} : vector<8x256xbf16>, vector<256x8xbf16>, vector<8x8xf32> -> vector<8x8xf32>
    %c0_3 = arith.constant 0 : index
    %4 = memref.load %arg4[%c0_3] : memref<1xf32, #tpu.memory_space<smem>>
    %5 = vector.broadcast %4 : f32 to vector<8x8xf32>
    %6 = arith.addf %3, %5 : vector<8x8xf32>
    %cst_4 = arith.constant 0.000000e+00 : f32
    %7 = vector.broadcast %cst_4 : f32 to vector<8x8xf32>
    %8 = arith.maximumf %6, %7 : vector<8x8xf32>
    %9 = arith.negf %8 : vector<8x8xf32>
    %10 = math.exp %9 : vector<8x8xf32>
    %cst_5 = arith.constant 1.000000e+00 : f32
    %11 = vector.broadcast %cst_5 : f32 to vector<8x8xf32>
    %12 = arith.addf %11, %10 : vector<8x8xf32>
    %13 = arith.divf %11, %12 : vector<8x8xf32>
    %cst_6 = arith.constant 1.200000e+00 : f32
    %14 = vector.broadcast %cst_6 : f32 to vector<8x8xf32>
    %15 = arith.mulf %13, %14 : vector<8x8xf32>
    %cst_7 = arith.constant -1.000000e-01 : f32
    %16 = vector.broadcast %cst_7 : f32 to vector<8x8xf32>
    %17 = arith.addf %15, %16 : vector<8x8xf32>
    %cst_8 = arith.constant 0.000000e+00 : f32
    %cst_9 = arith.constant 1.000000e+00 : f32
    %18 = vector.broadcast %cst_8 : f32 to vector<8x8xf32>
    %19 = arith.maximumf %18, %17 : vector<8x8xf32>
    %20 = vector.broadcast %cst_9 : f32 to vector<8x8xf32>
    %21 = arith.minimumf %20, %19 : vector<8x8xf32>
    %cst_10 = arith.constant -1.59859681 : f32
    %22 = vector.broadcast %cst_10 : f32 to vector<8x8xf32>
    %23 = arith.subf %8, %22 : vector<8x8xf32>
    %24 = arith.negf %23 : vector<8x8xf32>
    %25 = math.exp %24 : vector<8x8xf32>
    %cst_11 = arith.constant 1.000000e+00 : f32
    %26 = vector.broadcast %cst_11 : f32 to vector<8x8xf32>
    %27 = arith.addf %26, %25 : vector<8x8xf32>
    %28 = arith.divf %26, %27 : vector<8x8xf32>
    %c8_i32 = arith.constant 8 : i32
    %29 = arith.muli %arg0, %c8_i32 : i32
    %30 = tpu.iota {dimensions = array<i32: 0>} : vector<8x8xi32>
    %31 = vector.broadcast %29 : i32 to vector<8x8xi32>
    %32 = arith.addi %31, %30 : vector<8x8xi32>
    %c12_i32 = arith.constant 12 : i32
    %33 = vector.broadcast %c12_i32 : i32 to vector<8x8xi32>
    %34 = arith.cmpi slt, %32, %33 : vector<8x8xi32>
    %cst_12 = arith.constant 0.000000e+00 : f32
    %35 = vector.broadcast %cst_12 : f32 to vector<8x8xf32>
    %36 = arith.select %34, %28, %35 : vector<8x8xi1>, vector<8x8xf32>
    %37 = vector.shape_cast %36 : vector<8x8xf32> to vector<1x8x8xf32>
    %cst_13 = arith.constant dense<0.000000e+00> : vector<1xf32>
    %38 = vector.multi_reduction <add>, %37, %cst_13 [1, 2] : vector<1x8x8xf32> to vector<1xf32>
    %39 = vector.shape_cast %38 : vector<1xf32> to vector<1x1x1xf32>
    %40 = vector.extract %39[0, 0, 0] : f32 from vector<1x1x1xf32>
    %41 = vector.broadcast %40 : f32 to vector<1x8x128xf32>
    %c0_14 = arith.constant 0 : index
    %c0_15 = arith.constant 0 : index
    %c0_16 = arith.constant 0 : index
    %42 = vector.load %arg6[%c0_14, %c0_15, %c0_16] : memref<1x8x128xf32, #tpu.memory_space<vmem>>, vector<1x8x128xf32>
    tpu.vector_store %arg6[%c0_14, %c0_15, %c0_16], %41 {strides = array<i32>} : memref<1x8x128xf32, #tpu.memory_space<vmem>>, vector<1x8x128xf32>,
    %c0_17 = arith.constant 0 : index
    %c0_18 = arith.constant 0 : index
    %43 = vector.load %arg3[%c0_17, %c0_18] : memref<8x256xbf16, #tpu.memory_space<vmem>>, vector<8x256xbf16>
    %44 = arith.truncf %21 : vector<8x8xf32> to vector<8x8xbf16>
    %45 = arith.extf %44 : vector<8x8xbf16> to vector<8x8xf32>
    %46 = arith.subf %21, %45 : vector<8x8xf32>
    %47 = arith.truncf %46 : vector<8x8xf32> to vector<8x8xbf16>
    %cst_19 = arith.constant dense<0.000000e+00> : vector<8x256xf32>
    %48 = tpu.matmul %44, %43, %cst_19 {dimension_numbers = #tpu.dot_dimension_numbers<[1], [0], [0], [1], [0, 0, 1, 1], [], []>} : vector<8x8xbf16>, vector<8x256xbf16>, vector<8x256xf32> -> vector<8x256xf32>
    %cst_20 = arith.constant dense<0.000000e+00> : vector<8x256xf32>
    %49 = tpu.matmul %47, %43, %cst_20 {dimension_numbers = #tpu.dot_dimension_numbers<[1], [0], [0], [1], [0, 0, 1, 1], [], []>} : vector<8x8xbf16>, vector<8x256xbf16>, vector<8x256xf32> -> vector<8x256xf32>
    %50 = arith.addf %48, %49 : vector<8x256xf32>
    %51 = arith.mulf %0, %50 : vector<8x256xf32>
    %c0_21 = arith.constant 0 : index
    %c0_22 = arith.constant 0 : index
    %52 = vector.load %arg5[%c0_21, %c0_22] : memref<8x256xf32, #tpu.memory_space<vmem>>, vector<8x256xf32>
    tpu.vector_store %arg5[%c0_21, %c0_22], %51 {strides = array<i32>} : memref<8x256xf32, #tpu.memory_space<vmem>>, vector<8x256xf32>,
    return
  }
  func.func @transform_0(%arg0: i32) -> (i32, i32) {
    %c0_i32 = arith.constant 0 : i32
    %c0_i32_0 = arith.constant 0 : i32
    return %arg0, %c0_i32 : i32, i32
  }
  func.func @transform_1(%arg0: i32) -> (i32, i32) {
    %c0_i32 = arith.constant 0 : i32
    %c0_i32_0 = arith.constant 0 : i32
    %c0_i32_1 = arith.constant 0 : i32
    return %c0_i32, %c0_i32_0 : i32, i32
  }
  func.func @transform_2(%arg0: i32) -> (i32, i32) {
    %c0_i32 = arith.constant 0 : i32
    %c0_i32_0 = arith.constant 0 : i32
    %c0_i32_1 = arith.constant 0 : i32
    return %c0_i32, %c0_i32_0 : i32, i32
  }
  func.func @transform_3(%arg0: i32) -> i32 {
    %c0_i32 = arith.constant 0 : i32
    %c0_i32_0 = arith.constant 0 : i32
    return %c0_i32 : i32
  }
  func.func @transform_4(%arg0: i32) -> (i32, i32) {
    %c0_i32 = arith.constant 0 : i32
    %c0_i32_0 = arith.constant 0 : i32
    return %arg0, %c0_i32 : i32, i32
  }
  func.func @transform_5(%arg0: i32) -> (i32, i32, i32) {
    %c0_i32 = arith.constant 0 : i32
    %c0_i32_0 = arith.constant 0 : i32
    %c0_i32_1 = arith.constant 0 : i32
    return %arg0, %c0_i32, %c0_i32_0 : i32, i32, i32
  }
}

</mosaic_0001>

<llo_original>
// kernel: tpu_custom_call.1
$region0: #{tpu_custom_call.1}
  #allocation0 [shape = 'u32[]', space=smem, size = 0x4, offset = 0x4, fixed_abs, tag = 'smem constant byte address 0x4 - core index']
  #allocation1 [shape = 'u32[144,128]{1,0:T(1,128)}', space=vmem, size = 0x12000, scoped, tag = 'internal scratch']
  #allocation2 [shape = 'f32[1]{0:T(128)S(6)}', space=smem, size = 0x200, scoped, tag = 'scoped memory for tpu_custom_call.1']
  %s0 = inlined_call_operand.vmem [shape: f32[12,256], index: 0, kind: input, shape index: {}]
  %s1 = inlined_call_operand.vmem [shape: bf16[256,8], index: 1, kind: input, shape index: {}]
  %s2 = inlined_call_operand.vmem [shape: bf16[8,256], index: 2, kind: input, shape index: {}]
  %s3 = inlined_call_operand.<no memory space> [shape: f32[1], index: 3, kind: input, shape index: {}]
  %s4 = inlined_call_operand.hbm [shape: f32[12,256], index: 4, kind: output, shape index: {0}]
  %s5 = inlined_call_operand.hbm [shape: f32[2,8,128], index: 5, kind: output, shape index: {1}]
  %6 = xla_tuple %s4, %s5
  %s7 = sld [smem:[#allocation0]]
  $region57: #{tpu_custom_call.1} parent=0
    _
  %s9 = ssub.s32 1, %s7
  %s10 = scalar_select 0, %s9, %s7
  %11 = sst [smem:[#allocation2]] %s3
  $region1: #{tpu_custom_call.1} parent=0
    #allocation3 [shape = 'u8[16384]{0}', space=vmem, size = 0x4000, scoped, tag = 'output window, operand 0']
    #allocation4 [shape = 's32[2]{0}', space=sflag, size = 0x8, scoped, tag = 'scoped memory for tpu_custom_call.1']
    #allocation5 [shape = 'u8[8192]{0}', space=vmem, size = 0x2000, scoped, tag = 'output window, operand 1']
    #allocation6 [shape = 's32[2]{0}', space=sflag, size = 0x8, scoped, tag = 'scoped memory for tpu_custom_call.1']
    %12 = vsyncpa [#allocation4], 0
    %s13 = scalar_lea.sflag [#allocation4], 1
    %14 = vsyncpa %s13, 0
    %15 = vsyncpa [#allocation6], 0
    %s16 = scalar_lea.sflag [#allocation6], 1
    %17 = vsyncpa %s16, 0
    loop: start=0, step=1, limit=4
    $region2: #{tpu_custom_call.1} parent=1 // loop_pre_header
      _
    $region3: #{tpu_custom_call.1} parent=1 // loop_header
      %s19 = sphi 0, %s23
      %p20 = scmp.ge.s32.totalorder %s19, 4
      %s29 = sphi 0, %s31
      %s32 = sphi 0, %s29
      %s33 = sphi 0, %s32
      %s49 = sphi 0, %s33
      %s53 = sphi 0, %s53
      %s55 = sphi 0, %s53
      %s56 = sphi 0, %s55
      %s70 = sphi 0, %s56
      %s74 = sphi 0, %s74
      %s76 = sphi 0, %s74
      %s77 = sphi 0, %s76
      %s91 = sphi 0, %s77
      %s95 = sphi 0, %s95
      %s97 = sphi 0, %s95
      %s98 = sphi 0, %s97
      %s112 = sphi 0, %s98
      %s118 = sphi 0, %s120
      %s121 = sphi 0, %s118
      %s122 = sphi 0, %s121
      %s138 = sphi 0, %s122
      %s144 = sphi 0, %s146
      %s147 = sphi 0, %s144
      %s148 = sphi 0, %s147
      %s164 = sphi 0, %s148
    $region4: #{tpu_custom_call.1} parent=1 // loop_header_branch
      %22 = sbr.rel (%p20) target = $region8
    $region5: #{tpu_custom_call.1} parent=1 // loop_body
      %s24 = ssub.s32 %s19, 1
      %s25 = ssub.s32 %s19, 2
      %s26 = sadd.s32 %s19, 1
      %s27 = ssub.s32 %s19, %s26
      %p28 = scmp.eq.s32.totalorder %s27, 0
      %s30 = sadd.s32 %s29, 1
      %s31 = scalar_select %p28, %s29, %s30
      %p34 = pneg %p28
      %p35 = scmp.eq.s32.totalorder %s19, 1
      %p36 = por %p34, %p35
      %p37 = scmp.ne.s32.totalorder %s29, %s32
      %p38 = scmp.eq.s32.totalorder %s19, 0
      %p39 = por %p37, %p38
      %p40 = scmp.ne.s32.totalorder %s29, %s32
      %p41 = scmp.eq.s32.totalorder %s24, 1
      %p42 = por %p40, %p41
      %p43 = scmp.ne.s32.totalorder %s32, %s33
      %p44 = scmp.eq.s32.totalorder %s24, 0
      %p45 = por %p43, %p44
      %p46 = scmp.ne.s32.totalorder %s32, %s33
      %p47 = scmp.eq.s32.totalorder %s25, 1
      %p48 = por %p46, %p47
      %p50 = scmp.ne.s32.totalorder %s33, %s49
      %p51 = scmp.eq.s32.totalorder %s25, 0
      %p52 = por %p50, %p51
      %s54 = sadd.s32 %s53, 1
      %p57 = scmp.eq.s32.totalorder %s19, 1
      %p58 = scmp.ne.s32.totalorder %s53, %s55
      %p59 = scmp.eq.s32.totalorder %s19, 0
      %p60 = por %p58, %p59
      %p61 = scmp.ne.s32.totalorder %s53, %s55
      %p62 = scmp.eq.s32.totalorder %s24, 1
      %p63 = por %p61, %p62
      %p64 = scmp.ne.s32.totalorder %s55, %s56
      %p65 = scmp.eq.s32.totalorder %s24, 0
      %p66 = por %p64, %p65
      %p67 = scmp.ne.s32.totalorder %s55, %s56
      %p68 = scmp.eq.s32.totalorder %s25, 1
      %p69 = por %p67, %p68
      %p71 = scmp.ne.s32.totalorder %s56, %s70
      %p72 = scmp.eq.s32.totalorder %s25, 0
      %p73 = por %p71, %p72
      %s75 = sadd.s32 %s74, 1
      %p78 = scmp.eq.s32.totalorder %s19, 1
      %p79 = scmp.ne.s32.totalorder %s74, %s76
      %p80 = scmp.eq.s32.totalorder %s19, 0
      %p81 = por %p79, %p80
      %p82 = scmp.ne.s32.totalorder %s74, %s76
      %p83 = scmp.eq.s32.totalorder %s24, 1
      %p84 = por %p82, %p83
      %p85 = scmp.ne.s32.totalorder %s76, %s77
      %p86 = scmp.eq.s32.totalorder %s24, 0
      %p87 = por %p85, %p86
      %p88 = scmp.ne.s32.totalorder %s76, %s77
      %p89 = scmp.eq.s32.totalorder %s25, 1
      %p90 = por %p88, %p89
      %p92 = scmp.ne.s32.totalorder %s77, %s91
      %p93 = scmp.eq.s32.totalorder %s25, 0
      %p94 = por %p92, %p93
      %s96 = sadd.s32 %s95, 1
      %p99 = scmp.eq.s32.totalorder %s19, 1
      %p100 = scmp.ne.s32.totalorder %s95, %s97
      %p101 = scmp.eq.s32.totalorder %s19, 0
      %p102 = por %p100, %p101
      %p103 = scmp.ne.s32.totalorder %s95, %s97
      %p104 = scmp.eq.s32.totalorder %s24, 1
      %p105 = por %p103, %p104
      %p106 = scmp.ne.s32.totalorder %s97, %s98
      %p107 = scmp.eq.s32.totalorder %s24, 0
      %p108 = por %p106, %p107
      %p109 = scmp.ne.s32.totalorder %s97, %s98
      %p110 = scmp.eq.s32.totalorder %s25, 1
      %p111 = por %p109, %p110
      %p113 = scmp.ne.s32.totalorder %s98, %s112
      %p114 = scmp.eq.s32.totalorder %s25, 0
      %p115 = por %p113, %p114
      %s116 = ssub.s32 %s19, %s26
      %p117 = scmp.eq.s32.totalorder %s116, 0
      %s119 = sadd.s32 %s118, 1
      %s120 = scalar_select %p117, %s118, %s119
      %p123 = pneg %p117
      %p124 = scmp.eq.s32.totalorder %s19, 1
      %p125 = por %p123, %p124
      %p126 = scmp.ne.s32.totalorder %s118, %s121
      %p127 = scmp.eq.s32.totalorder %s19, 0
      %p128 = por %p126, %p127
      %p129 = scmp.ne.s32.totalorder %s118, %s121
      %p130 = scmp.eq.s32.totalorder %s24, 1
      %p131 = por %p129, %p130
      %p132 = scmp.ne.s32.totalorder %s121, %s122
      %p133 = scmp.eq.s32.totalorder %s24, 0
      %p134 = por %p132, %p133
      %p135 = scmp.ne.s32.totalorder %s121, %s122
      %p136 = scmp.eq.s32.totalorder %s25, 1
      %p137 = por %p135, %p136
      %p139 = scmp.ne.s32.totalorder %s122, %s138
      %p140 = scmp.eq.s32.totalorder %s25, 0
      %p141 = por %p139, %p140
      %s142 = ssub.s32 %s19, %s26
      %p143 = scmp.eq.s32.totalorder %s142, 0
      %s145 = sadd.s32 %s144, 1
      %s146 = scalar_select %p143, %s144, %s145
      %p149 = pneg %p143
      %p150 = scmp.eq.s32.totalorder %s19, 1
      %p151 = por %p149, %p150
      %p152 = scmp.ne.s32.totalorder %s144, %s147
      %p153 = scmp.eq.s32.totalorder %s19, 0
      %p154 = por %p152, %p153
      %p155 = scmp.ne.s32.totalorder %s144, %s147
      %p156 = scmp.eq.s32.totalorder %s24, 1
      %p157 = por %p155, %p156
      %p158 = scmp.ne.s32.totalorder %s147, %s148
      %p159 = scmp.eq.s32.totalorder %s24, 0
      %p160 = por %p158, %p159
      %p161 = scmp.ne.s32.totalorder %s147, %s148
      %p162 = scmp.eq.s32.totalorder %s25, 1
      %p163 = por %p161, %p162
      %p165 = scmp.ne.s32.totalorder %s148, %s164
      %p166 = scmp.eq.s32.totalorder %s25, 0
      %p167 = por %p165, %p166
      %p168 = scmp.le.s32.totalorder 1, %s19
      %p169 = scmp.lt.s32.totalorder %s19, 3
      %p170 = pnand %p168, %p169
      %p171 = pneg %p170
      // Predicated region
      $region9: #{tpu_custom_call.1} parent=5 // pred_check
        _
      $region10: #{tpu_custom_call.1} parent=5 // pred_check_branch
        %173 = sbr.rel (%p170) target = $region12
      $region11: #{tpu_custom_call.1} parent=5 // pred_region
        %s174 = ssub.s32 %s19, 1
        // Predicated region
        $region13: #{tpu_custom_call.1} parent=11 // pred_check
          %p175 = pneg %p66
        $region14: #{tpu_custom_call.1} parent=11 // pred_check_branch
          %177 = sbr.rel (%p175) target = $region16
        $region15: #{tpu_custom_call.1} parent=11 // pred_region
          _
        $region16: #{tpu_custom_call.1} parent=11 // pred_fallthru
          _
        // Predicated region
        $region17: #{tpu_custom_call.1} parent=11 // pred_check
          %p178 = pneg %p87
        $region18: #{tpu_custom_call.1} parent=11 // pred_check_branch
          %180 = sbr.rel (%p178) target = $region20
        $region19: #{tpu_custom_call.1} parent=11 // pred_region
          _
        $region20: #{tpu_custom_call.1} parent=11 // pred_fallthru
          _
        // Predicated region
        $region21: #{tpu_custom_call.1} parent=11 // pred_check
          %p181 = pneg %p108
        $region22: #{tpu_custom_call.1} parent=11 // pred_check_branch
          %183 = sbr.rel (%p181) target = $region24
        $region23: #{tpu_custom_call.1} parent=11 // pred_region
          _
        $region24: #{tpu_custom_call.1} parent=11 // pred_fallthru
          _
      $region12: #{tpu_custom_call.1} parent=5 // pred_fallthru
        _
      %p184 = scmp.lt.s32.totalorder %s19, 2
      // Predicated region
      $region25: #{tpu_custom_call.1} parent=5 // pred_check
        %p185 = pneg %p184
      $region26: #{tpu_custom_call.1} parent=5 // pred_check_branch
        %187 = sbr.rel (%p185) target = $region28
      $region27: #{tpu_custom_call.1} parent=5 // pred_region
        // Predicated region
        $region29: #{tpu_custom_call.1} parent=27 // pred_check
          %p188 = pneg %p39
        $region30: #{tpu_custom_call.1} parent=27 // pred_check_branch
          %190 = sbr.rel (%p188) target = $region32
        $region31: #{tpu_custom_call.1} parent=27 // pred_region
          %p191 = scmp.lt.s32.totalorder %s19, 1
          %s192 = scalar_select %p191, %s19, 1
          %s193 = smul.addr %s192, 2
          %s194 = smul.addr %s193, 8
          %s195 = scalar_lea.vmem %s0, %s194
        $region32: #{tpu_custom_call.1} parent=27 // pred_fallthru
          _
      $region28: #{tpu_custom_call.1} parent=5 // pred_fallthru
        _
      %p196 = scmp.le.s32.totalorder 1, %s19
      %p197 = scmp.lt.s32.totalorder %s19, 3
      %p198 = pnand %p196, %p197
      %p199 = pneg %p198
      // Predicated region
      $region33: #{tpu_custom_call.1} parent=5 // pred_check
        _
      $region34: #{tpu_custom_call.1} parent=5 // pred_check_branch
        %201 = sbr.rel (%p198) target = $region36
      $region35: #{tpu_custom_call.1} parent=5 // pred_region
        %s202 = ssub.s32 %s19, 1
        %p203 = scmp.lt.s32.totalorder %s24, 1
        %s204 = scalar_select %p203, %s24, 1
        %s205 = smul.addr %s204, 2
        %s206 = smul.addr %s205, 8
        %s207 = scalar_lea.vmem %s0, %s206
        %p208 = pneg %p45
        %p209 = pneg %p42
        %p210 = pneg %p66
        %p211 = pneg %p63
        %p212 = pneg %p87
        %p213 = pneg %p84
        %p214 = pneg %p108
        %p215 = pneg %p105
        %p216 = pneg %p134
        %p217 = pneg %p131
        %s218 = sand.u32 %s121, 1
        %s219 = scalar_lea.sflag [#allocation4], %s218
        %s220 = sand.u32 %s121, 1
        %s221 = smul.addr %s220, 16
        %s222 = scalar_lea.vmem [#allocation3], %s221
        %p223 = pneg %p160
        %p224 = pneg %p157
        %s225 = sand.u32 %s147, 1
        %s226 = scalar_lea.sflag [#allocation6], %s225
        %s227 = sand.u32 %s147, 1
        %s228 = smul.addr %s227, 8
        %s229 = scalar_lea.vmem [#allocation5], %s228
        %p230 = scmp.lt.s32.totalorder %s24, 1
        %s231 = scalar_select %p230, %s24, 1
        %s232 = smul.addr %s231, 2
        %s233 = smul.addr %s232, 8
        %s234 = scalar_lea.vmem %s0, %s233
        %v236 = vld [vmem:[%s234] sm:$0xff]
        %v237 = vld [vmem:[%s234 + $0x8] sm:$0xff]
        %v238 = vpack.c.bf16 %v236, %v236
        %v239 = vpack.c.bf16 %v237, %v237
        %v240 = vld [vmem:[%s1] sm:$0xf]
        %v241 = vld [vmem:[%s1 + $0x4] sm:$0xf]
        %v242 = vld [vmem:[%s1 + $0x8] sm:$0xf]
        %v243 = vld [vmem:[%s1 + $0xc] sm:$0xf]
        %v244 = vld [vmem:[%s1 + $0x10] sm:$0xf]
        %v245 = vld [vmem:[%s1 + $0x14] sm:$0xf]
        %v246 = vld [vmem:[%s1 + $0x18] sm:$0xf]
        %v247 = vld [vmem:[%s1 + $0x1c] sm:$0xf]
        %v248 = vld [vmem:[%s1 + $0x20] sm:$0xf]
        %v249 = vld [vmem:[%s1 + $0x24] sm:$0xf]
        %v250 = vld [vmem:[%s1 + $0x28] sm:$0xf]
        %v251 = vld [vmem:[%s1 + $0x2c] sm:$0xf]
        %v252 = vld [vmem:[%s1 + $0x30] sm:$0xf]
        %v253 = vld [vmem:[%s1 + $0x34] sm:$0xf]
        %v254 = vld [vmem:[%s1 + $0x38] sm:$0xf]
        %v255 = vld [vmem:[%s1 + $0x3c] sm:$0xf]
        %v256 = vld [vmem:[%s1 + $0x40] sm:$0xf]
        %v257 = vld [vmem:[%s1 + $0x44] sm:$0xf]
        %v258 = vld [vmem:[%s1 + $0x48] sm:$0xf]
        %v259 = vld [vmem:[%s1 + $0x4c] sm:$0xf]
        %v260 = vld [vmem:[%s1 + $0x50] sm:$0xf]
        %v261 = vld [vmem:[%s1 + $0x54] sm:$0xf]
        %v262 = vld [vmem:[%s1 + $0x58] sm:$0xf]
        %v263 = vld [vmem:[%s1 + $0x5c] sm:$0xf]
        %v264 = vld [vmem:[%s1 + $0x60] sm:$0xf]
        %v265 = vld [vmem:[%s1 + $0x64] sm:$0xf]
        %v266 = vld [vmem:[%s1 + $0x68] sm:$0xf]
        %v267 = vld [vmem:[%s1 + $0x6c] sm:$0xf]
        %v268 = vld [vmem:[%s1 + $0x70] sm:$0xf]
        %v269 = vld [vmem:[%s1 + $0x74] sm:$0xf]
        %v270 = vld [vmem:[%s1 + $0x78] sm:$0xf]
        %v271 = vld [vmem:[%s1 + $0x7c] sm:$0xf]
        %s272 = sld [smem:[#allocation2]]
        %v273 = vstv %s272
        %v306 = vunpack.c.l.b16 %v240
        %v307 = vunpack.c.l.b16 %v241
        %v308 = vunpack.c.l.b16 %v242
        %v309 = vunpack.c.l.b16 %v243
        %v310 = vunpack.c.l.b16 %v244
        %v311 = vunpack.c.l.b16 %v245
        %v312 = vunpack.c.l.b16 %v246
        %v313 = vunpack.c.l.b16 %v247
        %v314 = vunpack.c.l.b16 %v248
        %v315 = vunpack.c.l.b16 %v249
        %v316 = vunpack.c.l.b16 %v250
        %v317 = vunpack.c.l.b16 %v251
        %v318 = vunpack.c.l.b16 %v252
        %v319 = vunpack.c.l.b16 %v253
        %v320 = vunpack.c.l.b16 %v254
        %v321 = vunpack.c.l.b16 %v255
        %v322 = vunpack.c.l.b16 %v256
        %v323 = vunpack.c.l.b16 %v257
        %v324 = vunpack.c.l.b16 %v258
        %v325 = vunpack.c.l.b16 %v259
        %v326 = vunpack.c.l.b16 %v260
        %v327 = vunpack.c.l.b16 %v261
        %v328 = vunpack.c.l.b16 %v262
        %v329 = vunpack.c.l.b16 %v263
        %v330 = vunpack.c.l.b16 %v264
        %v331 = vunpack.c.l.b16 %v265
        %v332 = vunpack.c.l.b16 %v266
        %v333 = vunpack.c.l.b16 %v267
        %v334 = vunpack.c.l.b16 %v268
        %v335 = vunpack.c.l.b16 %v269
        %v336 = vunpack.c.l.b16 %v270
        %v337 = vunpack.c.l.b16 %v271
        %v338 = vpack.c.b16 %v307, %v306
        %v339 = vpack.c.b16 %v309, %v308
        %v340 = vpack.c.b16 %v311, %v310
        %v341 = vpack.c.b16 %v313, %v312
        %v342 = vpack.c.b16 %v315, %v314
        %v343 = vpack.c.b16 %v317, %v316
        %v344 = vpack.c.b16 %v319, %v318
        %v345 = vpack.c.b16 %v321, %v320
        %v346 = vpack.c.b16 %v323, %v322
        %v347 = vpack.c.b16 %v325, %v324
        %v348 = vpack.c.b16 %v327, %v326
        %v349 = vpack.c.b16 %v329, %v328
        %v350 = vpack.c.b16 %v331, %v330
        %v351 = vpack.c.b16 %v333, %v332
        %v352 = vpack.c.b16 %v335, %v334
        %v353 = vpack.c.b16 %v337, %v336
        %370 = vmatprep.subr.bf16.mxu0 0
        %371 = vmatpush1.bf16.msra.mxu0 %v338
        %372 = vmatprep.subr.bf16.mxu0 0
        %373 = vmatpush1.bf16.msra.mxu0 %v339
        %374 = vmatprep.subr.bf16.mxu0 0
        %375 = vmatpush1.bf16.msra.mxu0 %v340
        %376 = vmatprep.subr.bf16.mxu0 0
        %377 = vmatpush1.bf16.msra.mxu0 %v341
        %378 = vmatprep.subr.bf16.mxu0 0
        %379 = vmatpush1.bf16.msra.mxu0 %v342
        %380 = vmatprep.subr.bf16.mxu0 0
        %381 = vmatpush1.bf16.msra.mxu0 %v343
        %382 = vmatprep.subr.bf16.mxu0 0
        %383 = vmatpush1.bf16.msra.mxu0 %v344
        %384 = vmatprep.subr.bf16.mxu0 0
        %385 = vmatpush1.bf16.msra.mxu0 %v345
        %386 = vmatprep.subr.bf16.mxu0 0
        %387 = vmatpush1.bf16.msra.mxu0 %v346
        %388 = vmatprep.subr.bf16.mxu0 0
        %389 = vmatpush1.bf16.msra.mxu0 %v347
        %390 = vmatprep.subr.bf16.mxu0 0
        %391 = vmatpush1.bf16.msra.mxu0 %v348
        %392 = vmatprep.subr.bf16.mxu0 0
        %393 = vmatpush1.bf16.msra.mxu0 %v349
        %394 = vmatprep.subr.bf16.mxu0 0
        %395 = vmatpush1.bf16.msra.mxu0 %v350
        %396 = vmatprep.subr.bf16.mxu0 0
        %397 = vmatpush1.bf16.msra.mxu0 %v351
        %398 = vmatprep.subr.bf16.mxu0 0
        %399 = vmatpush1.bf16.msra.mxu0 %v352
        %400 = vmatprep.subr.bf16.mxu0 0
        %401 = vmatpush1.bf16.msra.mxu0 %v353
        %402 = vmatprep.mubr.bf16.mxu0 %v239
        %403 = vmatmul.mubr.bf16.gmra.mrb[0].mxu0 %v238
        %v404 = vpop.f32.mrb[0].mxu0
        %v405 = vadd.f32 %v273, %v404
        %v406 = vpop.f32.mrb[0].mxu0
        %v407 = vpop.f32.mrb[0].mxu0
        %v408 = vpop.f32.mrb[0].mxu0
        %409 = vdwg.mxu0
        %v410 = vmax.f32 %v405, 0.0
        %v411 = vxor.u32 %v410, 2147483648
        %v412 = vmul.f32 %v411, 1.442695
        %v413 = vpow.pop %v412
        %v414 = vadd.f32 %v413, 1.0
        %v415 = vrcp.pop %v414
        %v416 = vmul.f32 1.0, %v415
        %v417 = vmul.f32 %v416, 1.2
        %v418 = vadd.f32 %v417, -0.1
        %v419 = vmax.f32 %v418, 0.0
        %v420 = vmin.f32 %v419, 1.0
        %v421 = vsub.f32 %v410, -1.5985968
        %v422 = vxor.u32 %v421, 2147483648
        %v423 = vmul.f32 %v422, 1.442695
        %v424 = vpow.pop %v423
        %v425 = vadd.f32 %v424, 1.0
        %v426 = vrcp.pop %v425
        %v427 = vmul.f32 1.0, %v426
        %s428 = smul.u32 %s24, 8
        %v429 = vlaneseq
        %v430 = vshrl.u32 %v429, 7
        %v431 = vstv %s428
        %v432 = vadd.s32 %v431, %v430
        %vm433 = vcmp.lt.s32.totalorder %v432, 12
        %v434 = vsel %vm433, %v427, 0.0
        %vm435 = vcmask 64512
        %v436 = vsel %vm435, %v434, 0.0
        %437 = vadd.xlane.f32.xlu0 %v436
        %v438 = vpop.xlane.xlu0 %437
        %v439 = vrot.slane %v438, 4
        %v440 = vadd.f32 %v438, %v439
        %v441 = vrot.slane %v440, 2
        %v442 = vadd.f32 %v440, %v441
        %v443 = vrot.slane %v442, 1
        %v444 = vadd.f32 %v442, %v443
        %s445 = vtos %v444
        %v446 = vstv %s445
        %447 = vst [vmem:[%s229] sm:$0xff] %v446
        %v448 = vld [vmem:[%s2] sm:$0xff]
        %v449 = vpack.c.bf16 %v420, %v420
        %v450 = vunpack.c.l.bf16 %v449
        %v451 = vsub.f32 %v420, %v450
        %v452 = vpack.c.bf16 %v451, %v451
        %v454 = vunpack.c.l.b16 %v448
        %v455 = vunpack.c.h.b16 %v448
        %v456 = vpack.c.b16 %v454, %v454
        %v457 = vpack.c.b16 %v455, %v455
        %v459 = vsel %vm435, %v452, 0
        %vm461 = vcmask 1043456
        %v463 = vsel %vm461, %v456, 0
        %v466 = vsel %vm461, %v457, 0
        %468 = vmatprep.subr.bf16.mxu0 %v466
        %469 = vmatpush1.bf16.msra.mxu0 %v463
        %470 = vmatprep.subr.bf16.mxu0 0
        %471 = vmatpush1.bf16.msra.mxu0 0
        %472 = vmatprep.subr.bf16.mxu0 0
        %473 = vmatpush1.bf16.msra.mxu0 0
        %474 = vmatprep.subr.bf16.mxu0 0
        %475 = vmatpush1.bf16.msra.mxu0 0
        %476 = vmatprep.subr.bf16.mxu0 0
        %477 = vmatpush1.bf16.msra.mxu0 0
        %478 = vmatprep.subr.bf16.mxu0 0
        %479 = vmatpush1.bf16.msra.mxu0 0
        %480 = vmatprep.subr.bf16.mxu0 0
        %481 = vmatpush1.bf16.msra.mxu0 0
        %482 = vmatprep.subr.bf16.mxu0 0
        %483 = vmatpush1.bf16.msra.mxu0 0
        %484 = vmatprep.subr.bf16.mxu0 0
        %485 = vmatpush1.bf16.msra.mxu0 0
        %486 = vmatprep.subr.bf16.mxu0 0
        %487 = vmatpush1.bf16.msra.mxu0 0
        %488 = vmatprep.subr.bf16.mxu0 0
        %489 = vmatpush1.bf16.msra.mxu0 0
        %490 = vmatprep.subr.bf16.mxu0 0
        %491 = vmatpush1.bf16.msra.mxu0 0
        %492 = vmatprep.subr.bf16.mxu0 0
        %493 = vmatpush1.bf16.msra.mxu0 0
        %494 = vmatprep.subr.bf16.mxu0 0
        %495 = vmatpush1.bf16.msra.mxu0 0
        %496 = vmatprep.subr.bf16.mxu0 0
        %497 = vmatpush1.bf16.msra.mxu0 0
        %498 = vmatprep.subr.bf16.mxu0 0
        %499 = vmatpush1.bf16.msra.mxu0 0
        %500 = vmatprep.mubr.bf16.mxu0 0
        %501 = vmatmul.mubr.bf16.gmra.mrb[0].mxu0 %v459
        %v502 = vpop.f32.mrb[0].mxu0
        %v503 = vadd.f32 0.0, %v502
        %v504 = vpop.f32.mrb[0].mxu0
        %v505 = vadd.f32 0.0, %v504
        %v506 = vpop.f32.mrb[0].mxu0
        %v507 = vpop.f32.mrb[0].mxu0
        %508 = vdwg.mxu0
        %v510 = vsel %vm435, %v449, 0
        %512 = vmatprep.subr.bf16.mxu0 %v466
        %513 = vmatpush1.bf16.msra.mxu0 %v463
        %514 = vmatprep.subr.bf16.mxu0 0
        %515 = vmatpush1.bf16.msra.mxu0 0
        %516 = vmatprep.subr.bf16.mxu0 0
        %517 = vmatpush1.bf16.msra.mxu0 0
        %518 = vmatprep.subr.bf16.mxu0 0
        %519 = vmatpush1.bf16.msra.mxu0 0
        %520 = vmatprep.subr.bf16.mxu0 0
        %521 = vmatpush1.bf16.msra.mxu0 0
        %522 = vmatprep.subr.bf16.mxu0 0
        %523 = vmatpush1.bf16.msra.mxu0 0
        %524 = vmatprep.subr.bf16.mxu0 0
        %525 = vmatpush1.bf16.msra.mxu0 0
        %526 = vmatprep.subr.bf16.mxu0 0
        %527 = vmatpush1.bf16.msra.mxu0 0
        %528 = vmatprep.subr.bf16.mxu0 0
        %529 = vmatpush1.bf16.msra.mxu0 0
        %530 = vmatprep.subr.bf16.mxu0 0
        %531 = vmatpush1.bf16.msra.mxu0 0
        %532 = vmatprep.subr.bf16.mxu0 0
        %533 = vmatpush1.bf16.msra.mxu0 0
        %534 = vmatprep.subr.bf16.mxu0 0
        %535 = vmatpush1.bf16.msra.mxu0 0
        %536 = vmatprep.subr.bf16.mxu0 0
        %537 = vmatpush1.bf16.msra.mxu0 0
        %538 = vmatprep.subr.bf16.mxu0 0
        %539 = vmatpush1.bf16.msra.mxu0 0
        %540 = vmatprep.subr.bf16.mxu0 0
        %541 = vmatpush1.bf16.msra.mxu0 0
        %542 = vmatprep.subr.bf16.mxu0 0
        %543 = vmatpush1.bf16.msra.mxu0 0
        %544 = vmatprep.mubr.bf16.mxu0 0
        %545 = vmatmul.mubr.bf16.gmra.mrb[0].mxu0 %v510
        %v546 = vpop.f32.mrb[0].mxu0
        %v547 = vadd.f32 %v503, %v546
        %v548 = vpop.f32.mrb[0].mxu0
        %v549 = vadd.f32 %v505, %v548
        %v550 = vpop.f32.mrb[0].mxu0
        %v551 = vpop.f32.mrb[0].mxu0
        %552 = vdwg.mxu0
        %v553 = vmul.f32 %v236, %v547
        %v554 = vmul.f32 %v237, %v549
        %555 = vst [vmem:[%s222] sm:$0xff] %v553
        %556 = vst [vmem:[%s222 + $0x8] sm:$0xff] %v554
        %s557 = sand.u32 %s121, 1
        %s558 = scalar_lea.sflag [#allocation4], %s557
        %s559 = sand.u32 %s121, 1
        %s560 = smul.addr %s559, 16
        %s561 = scalar_lea.vmem [#allocation3], %s560
        %s562 = sand.u32 %s147, 1
        %s563 = scalar_lea.sflag [#allocation6], %s562
        %s564 = sand.u32 %s147, 1
        %s565 = smul.addr %s564, 8
        %s566 = scalar_lea.vmem [#allocation5], %s565
        // Predicated region
        $region37: #{tpu_custom_call.1} parent=35 // pred_check
          %p567 = pneg %p131
        $region38: #{tpu_custom_call.1} parent=35 // pred_check_branch
          %569 = sbr.rel (%p567) target = $region40
        $region39: #{tpu_custom_call.1} parent=35 // pred_region
          %s571 = ssub.s32 256, 256
          %572 = vsyncadd %s558, %s571
          %s573 = smul.addr %s24, 2
          %s574 = smul.addr %s573, 128
          %s575 = scalar_lea.hbm %s4, %s574
          %s577 = sshll.u32 %s561, 4
          %s578 = int_to_ptr.vmem [resolvable:$true] %s577
          %580 = dma.vmem_to_hbm [thread:$0]  %s578, 256, %s575, %s558
        $region40: #{tpu_custom_call.1} parent=35 // pred_fallthru
          _
        // Predicated region
        $region41: #{tpu_custom_call.1} parent=35 // pred_check
          %p581 = pneg %p157
        $region42: #{tpu_custom_call.1} parent=35 // pred_check_branch
          %583 = sbr.rel (%p581) target = $region44
        $region43: #{tpu_custom_call.1} parent=35 // pred_region
          %s585 = ssub.s32 128, 128
          %586 = vsyncadd %s563, %s585
          %s587 = smul.addr %s24, 128
          %s588 = scalar_lea.hbm %s5, %s587
          %s590 = sshll.u32 %s566, 4
          %s591 = int_to_ptr.vmem [resolvable:$true] %s590
          %593 = dma.vmem_to_hbm [thread:$0]  %s591, 128, %s588, %s563
        $region44: #{tpu_custom_call.1} parent=35 // pred_fallthru
          _
      $region36: #{tpu_custom_call.1} parent=5 // pred_fallthru
        _
      %p594 = scmp.le.s32.totalorder 2, %s19
      // Predicated region
      $region45: #{tpu_custom_call.1} parent=5 // pred_check
        %p595 = pneg %p594
      $region46: #{tpu_custom_call.1} parent=5 // pred_check_branch
        %597 = sbr.rel (%p595) target = $region48
      $region47: #{tpu_custom_call.1} parent=5 // pred_region
        %s598 = ssub.s32 %s19, 2
        // Predicated region
        $region49: #{tpu_custom_call.1} parent=47 // pred_check
          %p599 = pneg %p137
        $region50: #{tpu_custom_call.1} parent=47 // pred_check_branch
          %601 = sbr.rel (%p599) target = $region52
        $region51: #{tpu_custom_call.1} parent=47 // pred_region
          %s602 = sand.u32 %s122, 1
          %s603 = scalar_lea.sflag [#allocation4], %s602
          %s604 = sand.u32 %s122, 1
          %s605 = smul.addr %s604, 16
          %s606 = scalar_lea.vmem [#allocation3], %s605
          %607 = dma.done %s603, 256
        $region52: #{tpu_custom_call.1} parent=47 // pred_fallthru
          _
        // Predicated region
        $region53: #{tpu_custom_call.1} parent=47 // pred_check
          %p608 = pneg %p163
        $region54: #{tpu_custom_call.1} parent=47 // pred_check_branch
          %610 = sbr.rel (%p608) target = $region56
        $region55: #{tpu_custom_call.1} parent=47 // pred_region
          %s611 = sand.u32 %s148, 1
          %s612 = scalar_lea.sflag [#allocation6], %s611
          %s613 = sand.u32 %s148, 1
          %s614 = smul.addr %s613, 8
          %s615 = scalar_lea.vmem [#allocation5], %s614
          %616 = dma.done %s612, 128
        $region56: #{tpu_custom_call.1} parent=47 // pred_fallthru
          _
      $region48: #{tpu_custom_call.1} parent=5 // pred_fallthru
        _
    $region6: #{tpu_custom_call.1} parent=1 // loop_footer
      %s23 = sadd.s32 1, %s19
    $region7: #{tpu_custom_call.1} parent=1 // loop_footer_branch
      %18 = sbr.rel target = $region3
    $region8: #{tpu_custom_call.1} parent=1 // loop_exit
      _
    %617 = vsyncpa [#allocation4], 1
    %s618 = scalar_lea.sflag [#allocation4], 1
    %619 = vsyncpa %s618, 1
    %620 = vsyncpa [#allocation6], 1
    %s621 = scalar_lea.sflag [#allocation6], 1
    %622 = vsyncpa %s621, 1

</llo_original>
